<compile_context>
chip_gen: v5e
topology: v5e:2x2
jax: 0.10.0
libtpu: 0.0.40
codegen_flags: <defaults>
</compile_context>

<pallas_src>
import jax
import jax.numpy as jnp
from jax.experimental import pallas as pl
from jax.experimental.pallas import tpu as pltpu

_LANES = 128
_MIN_SPLIT_BYTES = 1 << 20  # split into >=2 blocks above ~1 MiB (v7x megacore)


def _sublane_pack(dtype) -> int:
    """Native sublane packing: 8 rows for 4-byte, 16 for 2-byte, 32 for 1-byte."""
    itemsize = jnp.dtype(dtype).itemsize
    return max(8, 32 // max(itemsize, 1))


def _compute_dtype(dtype):
    """bf16-native math on v6e/v7x; f32 everywhere else (v5e has no bf16 VPU/EUP)."""
    if jnp.dtype(dtype) == jnp.dtype(jnp.bfloat16):
        try:
            kind = jax.devices()[0].device_kind.lower()
        except Exception:  # pragma: no cover - defensive only
            kind = ""
        if ("v6" in kind) or ("v7" in kind):
            return jnp.bfloat16
    return jnp.float32


def _make_kernel(compute_dtype):
    def kernel(x_ref, o_ref):
        # 1 - exp(-relu(x)): one EUP transcendental + 3 VPU ops per element.
        # This is the literal module formula; no extra small-x guard so the
        # VALU slot never becomes the binding unit for this HBM-bound stream.
        x = x_ref[...].astype(compute_dtype)
        r = jnp.maximum(x, 0.0)
        y = 1.0 - jnp.exp(-r)
        o_ref[...] = y.astype(o_ref.dtype)

    return kernel


def _pallas_forward(x2d, *, target_block_bytes, donate):
    rows, _ = x2d.shape
    dtype = x2d.dtype
    itemsize = jnp.dtype(dtype).itemsize
    pack = _sublane_pack(dtype)

    # ~4 MiB row tile, rounded to the sublane packing.
    rows_target = max(pack, (target_block_bytes // (_LANES * itemsize)) // pack * pack)

    # v7x megacore: guarantee >= 2 grid blocks once the slab is > ~1 MiB so the
    # "parallel" grid axis can feed both TensorCores (costs nothing on 1-TC chips).
    if rows * _LANES * itemsize >= _MIN_SPLIT_BYTES and rows > pack:
        half = pl.cdiv(pl.cdiv(rows, 2), pack) * pack
        rows_target = min(rows_target, half)

    row_tile = min(rows, rows_target)
    # Whenever row_tile < rows it is a pack multiple by construction; when it
    # equals rows it is the full array dim, which Mosaic accepts as-is.
    grid = (pl.cdiv(rows, row_tile),)

    n_elems = rows * _LANES
    return pl.pallas_call(
        _make_kernel(_compute_dtype(dtype)),
        out_shape=jax.ShapeDtypeStruct((rows, _LANES), dtype),
        grid_spec=pltpu.PrefetchScalarGridSpec(
            num_scalar_prefetch=0,
            grid=grid,
            in_specs=[pl.BlockSpec((row_tile, _LANES), lambda i: (i, 0))],
            out_specs=pl.BlockSpec((row_tile, _LANES), lambda i: (i, 0)),
        ),
        compiler_params=pltpu.CompilerParams(
            # "parallel" lets v7x shard the >=2 blocks across its 2 TensorCores;
            # measured neutral on v5e/v6e so it costs nothing there.
            dimension_semantics=("parallel",),
            # 2 in + 2 out double-buffered ~4 MiB blocks (~16 MiB) plus headroom;
            # fits v7x's 32 MiB scoped / 64 MiB physical VMEM budget.
            vmem_limit_bytes=32 * 1024 * 1024,
        ),
        cost_estimate=pl.CostEstimate(
            flops=2 * n_elems,
            transcendentals=n_elems,
            bytes_accessed=2 * n_elems * itemsize,
        ),
        input_output_aliases=({0: 0} if donate else {}),
    )(x2d)


def saturating_poisson(x: jax.Array, *, target_block_bytes: int = 4 << 20,
                       donate: bool = False) -> jax.Array:
    """Computes 1 - exp(-relu(x)), elementwise, matching the PyTorch module."""
    orig_shape = x.shape
    orig_dtype = x.dtype

    n = x.size
    if n == 0:
        return x

    x_flat = jnp.reshape(x, (-1,))
    n_main = (n // _LANES) * _LANES  # lane-aligned prefix length

    out_parts = []
    if n_main:
        prefix = x_flat if n_main == n else x_flat[:n_main]
        x2d = jnp.reshape(prefix, (n_main // _LANES, _LANES))
        out2d = _pallas_forward(
            x2d,
            target_block_bytes=target_block_bytes,
            donate=donate and n_main == n,
        )
        out_parts.append(jnp.reshape(out2d, (-1,)))

    if n_main != n:
        # Ragged tail (< 128 elements): tiny, handled with plain jnp so the
        # aligned prefix stays completely pad/slice free (no whole-tensor
        # jnp.pad / output-slice passes).
        ct = _compute_dtype(orig_dtype)
        t = x_flat[n_main:].astype(ct)
        tail_out = (1.0 - jnp.exp(-jnp.maximum(t, 0.0))).astype(orig_dtype)
        out_parts.append(tail_out)

    out_flat = out_parts[0] if len(out_parts) == 1 else jnp.concatenate(out_parts)
    return jnp.reshape(out_flat, orig_shape)


if __name__ == "__main__":
    key = jax.random.PRNGKey(0)
    # NCHW input, small shapes: batch=2, channels=4, spatial=16x16
    x = jax.random.normal(key, (2, 4, 16, 16), dtype=jnp.float32)

    y = jax.block_until_ready(saturating_poisson(x))

    # Reference check (pure JAX, literal module formula)
    y_ref = 1.0 - jnp.exp(-jnp.maximum(x, 0.0))
    assert y.shape == x.shape and y.dtype == x.dtype
    assert jnp.allclose(y, y_ref, atol=1e-6, rtol=1e-6)

    print("KERNEL_OK")
</pallas_src>

<mosaic_0001>
module attributes {stable_mosaic.version = 11 : i64} {
  func.func @kernel(%arg0: i32, %arg1: memref<16x128xf32, #tpu.memory_space<vmem>>, %arg2: memref<16x128xf32, #tpu.memory_space<vmem>>) attributes {dimension_semantics = [#tpu.dimension_semantics<parallel>], iteration_bounds = array<i64: 1>, scalar_prefetch = 0 : i64, scratch_operands = 0 : i64, tpu.core_type = #tpu.core_type<tc>, window_params = [{transform_indices = @transform_0, window_bounds = array<i64: 16, 128>}, {transform_indices = @transform_1, window_bounds = array<i64: 16, 128>}]} {
    %c0 = arith.constant 0 : index
    %c0_0 = arith.constant 0 : index
    %0 = vector.load %arg1[%c0, %c0_0] : memref<16x128xf32, #tpu.memory_space<vmem>>, vector<16x128xf32>
    %cst = arith.constant 0.000000e+00 : f32
    %1 = vector.broadcast %cst : f32 to vector<16x128xf32>
    %2 = arith.maximumf %0, %1 : vector<16x128xf32>
    %cst_1 = arith.constant 0.000000e+00 : f32
    %3 = vector.broadcast %cst_1 : f32 to vector<16x128xf32>
    %4 = arith.subf %3, %2 : vector<16x128xf32>
    %5 = math.exp %4 : vector<16x128xf32>
    %cst_2 = arith.constant 1.000000e+00 : f32
    %6 = vector.broadcast %cst_2 : f32 to vector<16x128xf32>
    %7 = arith.subf %6, %5 : vector<16x128xf32>
    %c0_3 = arith.constant 0 : index
    %c0_4 = arith.constant 0 : index
    %8 = vector.load %arg2[%c0_3, %c0_4] : memref<16x128xf32, #tpu.memory_space<vmem>>, vector<16x128xf32>
    tpu.vector_store %arg2[%c0_3, %c0_4], %7 {strides = array<i32>} : memref<16x128xf32, #tpu.memory_space<vmem>>, vector<16x128xf32>,
    return
  }
  func.func @transform_0(%arg0: i32) -> (i32, i32) {
    %c0_i32 = arith.constant 0 : i32
    %c0_i32_0 = arith.constant 0 : i32
    return %arg0, %c0_i32 : i32, i32
  }
  func.func @transform_1(%arg0: i32) -> (i32, i32) {
    %c0_i32 = arith.constant 0 : i32
    %c0_i32_0 = arith.constant 0 : i32
    return %arg0, %c0_i32 : i32, i32
  }
}

</mosaic_0001>

<llo_original>
// kernel: tpu_custom_call.1
$region0: #{tpu_custom_call.1}
  #allocation0 [shape = 'u32[]', space=smem, size = 0x4, offset = 0x4, fixed_abs, tag = 'smem constant byte address 0x4 - core index']
  #allocation1 [shape = 'u32[72,128]{1,0:T(1,128)}', space=vmem, size = 0x9000, scoped, tag = 'internal scratch']
  %s0 = inlined_call_operand.hbm [shape: f32[16,128], index: 0, kind: input, shape index: {}]
  %s1 = inlined_call_operand.hbm [shape: f32[16,128], index: 1, kind: output, shape index: {}]
  %s2 = sld [smem:[#allocation0]]
  $region18: #{tpu_custom_call.1} parent=0
    _
  %s4 = ssub.s32 1, %s2
  %s5 = scalar_select 0, %s4, %s2
  $region1: #{tpu_custom_call.1} parent=0
    #allocation2 [shape = 'u8[8192]{0}', space=vmem, size = 0x2000, scoped, tag = 'input window, operand 0, single buffered']
    #allocation3 [shape = 's32[1]{0}', space=sflag, size = 0x4, scoped, tag = 'scoped memory for tpu_custom_call.1']
    #allocation4 [shape = 's32[1]{0}', space=sflag, size = 0x4, scoped, tag = 'scoped memory for tpu_custom_call.1']
    #allocation5 [shape = 'u8[8192]{0}', space=vmem, size = 0x2000, scoped, tag = 'output window, operand 0, single buffered']
    %6 = vsyncpa [#allocation3], 0
    %7 = vsyncpa [#allocation4], 0
    // Predicated region
    $region2: #{tpu_custom_call.1} parent=1 // pred_check
      _
    $region3: #{tpu_custom_call.1} parent=1 // pred_check_branch
      %9 = sbr.rel (0) target = $region5
    $region4: #{tpu_custom_call.1} parent=1 // pred_region
      %11 = vsyncadd [#allocation3], 0
      %s12 = sshll.u32 %s0, 4
      %s13 = int_to_ptr.hbm [resolvable:$true] %s12
      %s14 = sshll.u32 [#allocation2], 4
      %s15 = int_to_ptr.vmem [resolvable:$true] %s14
      %20 = dma.hbm_to_vmem [thread:$0]  %s13, 256, %s15, [#allocation3], 128, 128, 8
    $region5: #{tpu_custom_call.1} parent=1 // pred_fallthru
      _
    // Predicated region
    $region6: #{tpu_custom_call.1} parent=1 // pred_check
      _
    $region7: #{tpu_custom_call.1} parent=1 // pred_check_branch
      %22 = sbr.rel (0) target = $region9
    $region8: #{tpu_custom_call.1} parent=1 // pred_region
      %24 = dma.done [#allocation3], 256
    $region9: #{tpu_custom_call.1} parent=1 // pred_fallthru
      _
    %v25 = vld [vmem:[#allocation2] sm:$0xff]
    %v26 = vld [vmem:[#allocation2 + $0x8] sm:$0xff]
    %v27 = vmax.f32 %v25, 0.0
    %v28 = vmax.f32 %v26, 0.0
    %v29 = vsub.f32 0.0, %v27
    %v30 = vsub.f32 0.0, %v28
    %v31 = vmul.f32 %v29, 1.442695
    %v32 = vpow.pop %v31
    %v33 = vmul.f32 %v30, 1.442695
    %v34 = vpow.pop %v33
    %v35 = vsub.f32 1.0, %v32
    %v36 = vsub.f32 1.0, %v34
    %37 = vst [vmem:[#allocation5] sm:$0xff] %v35
    %38 = vst [vmem:[#allocation5 + $0x8] sm:$0xff] %v36
    // Predicated region
    $region10: #{tpu_custom_call.1} parent=1 // pred_check
      _
    $region11: #{tpu_custom_call.1} parent=1 // pred_check_branch
      %40 = sbr.rel (0) target = $region13
    $region12: #{tpu_custom_call.1} parent=1 // pred_region
      %42 = vsyncadd [#allocation4], 0
      %s43 = sshll.u32 [#allocation5], 4
      %s44 = int_to_ptr.vmem [resolvable:$true] %s43
      %s45 = sshll.u32 %s1, 4
      %s46 = int_to_ptr.hbm [resolvable:$true] %s45
      %51 = dma.vmem_to_hbm [thread:$0]  %s44, 256, %s46, [#allocation4], 128, 128, 8
    $region13: #{tpu_custom_call.1} parent=1 // pred_fallthru
      _
    // Predicated region
    $region14: #{tpu_custom_call.1} parent=1 // pred_check
      _
    $region15: #{tpu_custom_call.1} parent=1 // pred_check_branch
      %53 = sbr.rel (0) target = $region17
    $region16: #{tpu_custom_call.1} parent=1 // pred_region
      %55 = dma.done [#allocation4], 256
    $region17: #{tpu_custom_call.1} parent=1 // pred_fallthru
      _
    %56 = vsyncpa [#allocation3], 1
    %57 = vsyncpa [#allocation4], 1

</llo_original>
